<compile_context>
chip_gen: v5e
topology: v5e:2x2
jax: 0.10.0
libtpu: 0.0.40
codegen_flags: <defaults>
</compile_context>

<pallas_src>
import numpy as np
import jax
import jax.numpy as jnp
from jax.experimental import pallas as pl
from jax.experimental.pallas import tpu as pltpu


def _round_up(x: int, m: int) -> int:
    return ((x + m - 1) // m) * m


def _make_interaction_kernel(F: int, D: int):
    """Kernel over one (Bb, ...) batch block.

    dense_ref:  (Bb, D)
    sparse_ref: (Bb, F*D)   (feature f lives in lanes [f*D, (f+1)*D))
    o_ref:      (Bb, D + F + C(F, 2))
    """
    T = F + 1

    def kernel(dense_ref, sparse_ref, o_ref):
        dense = dense_ref[...]          # (Bb, D)
        sparse2d = sparse_ref[...]      # (Bb, F*D)
        Bb = dense.shape[0]

        # combined[b, t, :] == t-th row of torch.cat((dense.unsqueeze(1), sparse), 1)
        combined = jnp.concatenate([dense, sparse2d], axis=-1).reshape(Bb, T, D)

        # Per-sample Gram matrix on the MXU, f32 accumulation.
        gram = jnp.einsum(
            "btd,bsd->bts", combined, combined,
            preferred_element_type=jnp.float32,
        )  # (Bb, T, T) f32

        # Strict upper triangle, row-major — identical ordering to
        # torch.triu_indices(T, T, offset=1):  (0,1)...(0,F), (1,2)...(1,F), ...
        # Assemble the full output row lane-contiguously so the write below is a
        # single lane-dense store (no width-1 masked partial stores).
        pieces = [dense.astype(o_ref.dtype)]
        for r in range(T - 1):
            pieces.append(gram[:, r, r + 1:].astype(o_ref.dtype))
        o_ref[...] = jnp.concatenate(pieces, axis=-1)

    return kernel


def interaction_arch(
    dense_features: jax.Array,
    sparse_features: jax.Array,
    *,
    block_b: int = 256,
    out_dtype=None,
) -> jax.Array:
    """
    dense_features:  (B, D)
    sparse_features: (B, F, D)  -- all sparse feature dims must equal D
    returns:         (B, D + F + F*(F-1)//2)
    """
    B, D = dense_features.shape
    out_dtype = dense_features.dtype if out_dtype is None else out_dtype

    if sparse_features.ndim != 3 or sparse_features.shape[0] != B:
        raise ValueError("sparse_features must be (B, F, D) with matching batch size")
    F = sparse_features.shape[1]
    if F <= 0:
        return dense_features.astype(out_dtype)
    if sparse_features.shape[2] != D:
        raise ValueError(
            f"sparse feature dim should be all the same as dense feature dim {D}"
        )

    P = F + F * (F - 1) // 2          # number of strict-upper-triangle pairs
    OUT = D + P

    # Lane-dense 2-D layout for sparse (free, metadata-only reshape at XLA level).
    sparse2d = sparse_features.reshape(B, F * D)

    # Batch block: multiple of 8 sublanes.  Prefer >= 2 grid steps (halve Bb if
    # needed) so the parallel batch axis can shard across both TCs on v7x.
    Bb = max(8, _round_up(min(block_b, B), 8))
    while Bb > 8 and _round_up(B, Bb) // Bb < 2:
        Bb = max(8, _round_up(Bb // 2, 8))
    B_pad = _round_up(B, Bb)
    if B_pad != B:
        dense_p = jnp.pad(dense_features, ((0, B_pad - B), (0, 0)))
        sparse_p = jnp.pad(sparse2d, ((0, B_pad - B), (0, 0)))
    else:
        dense_p, sparse_p = dense_features, sparse2d

    itemsize_in = np.dtype(dense_features.dtype).itemsize
    itemsize_out = np.dtype(out_dtype).itemsize
    bytes_accessed = (
        B_pad * D * itemsize_in + B_pad * F * D * itemsize_in + B_pad * OUT * itemsize_out
    )
    flops = 2 * B_pad * (F + 1) * (F + 1) * D

    out = pl.pallas_call(
        _make_interaction_kernel(F, D),
        out_shape=jax.ShapeDtypeStruct((B_pad, OUT), out_dtype),
        grid=(B_pad // Bb,),
        in_specs=[
            pl.BlockSpec((Bb, D), lambda i: (i, 0)),
            pl.BlockSpec((Bb, F * D), lambda i: (i, 0)),
        ],
        out_specs=pl.BlockSpec((Bb, OUT), lambda i: (i, 0)),
        compiler_params=pltpu.CompilerParams(
            # Batch grid axis is embarrassingly parallel -> megacore sharding.
            dimension_semantics=("parallel",),
            # Above the 16/32 MiB scoped defaults, below v7x's 64 MiB physical;
            # leaves room to sweep Bb up to ~512 at DLRM scale (F=26, D=128, f32).
            vmem_limit_bytes=48 * 1024 * 1024,
        ),
        cost_estimate=pl.CostEstimate(
            flops=flops, transcendentals=0, bytes_accessed=bytes_accessed
        ),
    )(dense_p, sparse_p)

    return out[:B] if B_pad != B else out


if __name__ == "__main__":
    # Small demo shapes; block_b=8 forces a multi-step grid plus a padded tail
    # (B=20 -> padded to 24, grid=(3,)) so the blocking/padding path is exercised.
    # D=128 keeps the in-kernel (Bb, T*D) -> (Bb, T, D) split lane-aligned.
    B, F, D = 20, 4, 128

    key = jax.random.PRNGKey(0)
    k_dense, k_sparse = jax.random.split(key)
    # Small-integer-valued inputs: the Gram entries are exactly representable
    # regardless of MXU precision mode, so the reference comparison is exact.
    dense = jax.random.randint(k_dense, (B, D), 0, 4).astype(jnp.float32)
    sparse = jax.random.randint(k_sparse, (B, F, D), 0, 4).astype(jnp.float32)

    out = jax.block_until_ready(interaction_arch(dense, sparse, block_b=8))

    # Pure-JAX reference for correctness.
    combined_ref = jnp.concatenate([dense[:, None, :], sparse], axis=1)
    gram_ref = jnp.einsum("btd,bsd->bts", combined_ref, combined_ref)
    iu_r, iu_c = np.triu_indices(F + 1, k=1)
    ref = jnp.concatenate([dense, gram_ref[:, iu_r, iu_c]], axis=1)

    assert out.shape == (B, D + F + F * (F - 1) // 2), out.shape
    np.testing.assert_allclose(np.asarray(out), np.asarray(ref), atol=1e-5, rtol=1e-6)

    print("KERNEL_OK")
</pallas_src>

<mosaic_0001>
module attributes {stable_mosaic.version = 11 : i64} {
  func.func @kernel(%arg0: i32, %arg1: memref<8x128xf32, #tpu.memory_space<vmem>>, %arg2: memref<8x512xf32, #tpu.memory_space<vmem>>, %arg3: memref<8x138xf32, #tpu.memory_space<vmem>>) attributes {dimension_semantics = [#tpu.dimension_semantics<parallel>], iteration_bounds = array<i64: 3>, scalar_prefetch = 0 : i64, scratch_operands = 0 : i64, tpu.core_type = #tpu.core_type<tc>, window_params = [{transform_indices = @transform_0, window_bounds = array<i64: 8, 128>}, {transform_indices = @transform_1, window_bounds = array<i64: 8, 512>}, {transform_indices = @transform_2, window_bounds = array<i64: 8, 138>}]} {
    %c0 = arith.constant 0 : index
    %c0_0 = arith.constant 0 : index
    %0 = vector.load %arg1[%c0, %c0_0] : memref<8x128xf32, #tpu.memory_space<vmem>>, vector<8x128xf32>
    %c0_1 = arith.constant 0 : index
    %c0_2 = arith.constant 0 : index
    %1 = vector.load %arg2[%c0_1, %c0_2] : memref<8x512xf32, #tpu.memory_space<vmem>>, vector<8x512xf32>
    %2 = tpu.concatenate %0, %1 in 1 : vector<8x128xf32>, vector<8x512xf32> -> vector<8x640xf32>
    %3 = vector.shape_cast %2 : vector<8x640xf32> to vector<8x5x128xf32>
    "tpu.trace_start"() <{level = 10 : i32, message = "btd,bsd->bts"}> : () -> ()
    %cst = arith.constant dense<0.000000e+00> : vector<8x5x5xf32>
    %4 = tpu.matmul %3, %3, %cst {dimension_numbers = #tpu.dot_dimension_numbers<[2], [2], [1], [1], [0, 0, 0, 1, 1, 1], [0], [0]>} : vector<8x5x128xf32>, vector<8x5x128xf32>, vector<8x5x5xf32> -> vector<8x5x5xf32>
    "tpu.trace_stop"() : () -> ()
    %5 = vector.extract_strided_slice %4 {offsets = [0, 0, 1], sizes = [8, 1, 4], strides = [1, 1, 1]} : vector<8x5x5xf32> to vector<8x1x4xf32>
    %6 = vector.shape_cast %5 : vector<8x1x4xf32> to vector<8x4xf32>
    %7 = vector.extract_strided_slice %4 {offsets = [0, 1, 2], sizes = [8, 1, 3], strides = [1, 1, 1]} : vector<8x5x5xf32> to vector<8x1x3xf32>
    %8 = vector.shape_cast %7 : vector<8x1x3xf32> to vector<8x3xf32>
    %9 = vector.extract_strided_slice %4 {offsets = [0, 2, 3], sizes = [8, 1, 2], strides = [1, 1, 1]} : vector<8x5x5xf32> to vector<8x1x2xf32>
    %10 = vector.shape_cast %9 : vector<8x1x2xf32> to vector<8x2xf32>
    %11 = vector.extract_strided_slice %4 {offsets = [0, 3, 4], sizes = [8, 1, 1], strides = [1, 1, 1]} : vector<8x5x5xf32> to vector<8x1x1xf32>
    %12 = vector.shape_cast %11 : vector<8x1x1xf32> to vector<8x1xf32>
    %13 = tpu.concatenate %0, %6, %8, %10, %12 in 1 : vector<8x128xf32>, vector<8x4xf32>, vector<8x3xf32>, vector<8x2xf32>, vector<8x1xf32> -> vector<8x138xf32>
    %c0_3 = arith.constant 0 : index
    %c0_4 = arith.constant 0 : index
    %14 = vector.load %arg3[%c0_3, %c0_4] : memref<8x138xf32, #tpu.memory_space<vmem>>, vector<8x138xf32>
    tpu.vector_store %arg3[%c0_3, %c0_4], %13 {strides = array<i32>} : memref<8x138xf32, #tpu.memory_space<vmem>>, vector<8x138xf32>,
    return
  }
  func.func @transform_0(%arg0: i32) -> (i32, i32) {
    %c0_i32 = arith.constant 0 : i32
    %c0_i32_0 = arith.constant 0 : i32
    return %arg0, %c0_i32 : i32, i32
  }
  func.func @transform_1(%arg0: i32) -> (i32, i32) {
    %c0_i32 = arith.constant 0 : i32
    %c0_i32_0 = arith.constant 0 : i32
    return %arg0, %c0_i32 : i32, i32
  }
  func.func @transform_2(%arg0: i32) -> (i32, i32) {
    %c0_i32 = arith.constant 0 : i32
    %c0_i32_0 = arith.constant 0 : i32
    return %arg0, %c0_i32 : i32, i32
  }
}

</mosaic_0001>

<llo_original>
// kernel: tpu_custom_call.1
$region0: #{tpu_custom_call.1}
  #allocation0 [shape = 'u32[]', space=smem, size = 0x4, offset = 0x4, fixed_abs, tag = 'smem constant byte address 0x4 - core index']
  #allocation1 [shape = 'u32[72,128]{1,0:T(1,128)}', space=vmem, size = 0x9000, scoped, tag = 'internal scratch']
  %s0 = inlined_call_operand.hbm [shape: f32[24,128], index: 0, kind: input, shape index: {}]
  %s1 = inlined_call_operand.hbm [shape: f32[24,512], index: 1, kind: input, shape index: {}]
  %s2 = inlined_call_operand.hbm [shape: f32[24,138], index: 2, kind: output, shape index: {}]
  %s3 = sld [smem:[#allocation0]]
  $region49: #{tpu_custom_call.1} parent=0
    _
  %s5 = ssub.s32 1, %s3
  %s6 = scalar_select 0, %s5, %s3
  $region1: #{tpu_custom_call.1} parent=0
    #allocation2 [shape = 'u8[8192]{0}', space=vmem, size = 0x2000, scoped, tag = 'input window, operand 0']
    #allocation3 [shape = 's32[2]{0}', space=sflag, size = 0x8, scoped, tag = 'scoped memory for tpu_custom_call.1']
    #allocation4 [shape = 's32[2]{0}', space=sflag, size = 0x8, scoped, tag = 'scoped memory for tpu_custom_call.1']
    #allocation5 [shape = 'u8[32768]{0}', space=vmem, size = 0x8000, scoped, tag = 'input window, operand 1']
    #allocation6 [shape = 's32[2]{0}', space=sflag, size = 0x8, scoped, tag = 'scoped memory for tpu_custom_call.1']
    #allocation7 [shape = 'u8[16384]{0}', space=vmem, size = 0x4000, scoped, tag = 'output window, operand 0']
    %7 = vsyncpa [#allocation3], 0
    %s8 = scalar_lea.sflag [#allocation3], 1
    %9 = vsyncpa %s8, 0
    %10 = vsyncpa [#allocation6], 0
    %s11 = scalar_lea.sflag [#allocation6], 1
    %12 = vsyncpa %s11, 0
    %13 = vsyncpa [#allocation4], 0
    %s14 = scalar_lea.sflag [#allocation4], 1
    %15 = vsyncpa %s14, 0
    loop: start=0, step=1, limit=5
    $region2: #{tpu_custom_call.1} parent=1 // loop_pre_header
      _
    $region3: #{tpu_custom_call.1} parent=1 // loop_header
      %s17 = sphi 0, %s21
      %p18 = scmp.ge.s32.totalorder %s17, 5
      %s27 = sphi 0, %s29
      %s30 = sphi 0, %s27
      %s31 = sphi 0, %s30
      %s47 = sphi 0, %s31
      %s53 = sphi 0, %s55
      %s56 = sphi 0, %s53
      %s57 = sphi 0, %s56
      %s73 = sphi 0, %s57
      %s79 = sphi 0, %s81
      %s82 = sphi 0, %s79
      %s83 = sphi 0, %s82
      %s99 = sphi 0, %s83
    $region4: #{tpu_custom_call.1} parent=1 // loop_header_branch
      %20 = sbr.rel (%p18) target = $region8
    $region5: #{tpu_custom_call.1} parent=1 // loop_body
      %s22 = ssub.s32 %s17, 1
      %s23 = ssub.s32 %s17, 2
      %s24 = sadd.s32 %s17, 1
      %s25 = ssub.s32 %s17, %s24
      %p26 = scmp.eq.s32.totalorder %s25, 0
      %s28 = sadd.s32 %s27, 1
      %s29 = scalar_select %p26, %s27, %s28
      %p32 = pneg %p26
      %p33 = scmp.eq.s32.totalorder %s17, 2
      %p34 = por %p32, %p33
      %p35 = scmp.ne.s32.totalorder %s27, %s30
      %p36 = scmp.eq.s32.totalorder %s17, 0
      %p37 = por %p35, %p36
      %p38 = scmp.ne.s32.totalorder %s27, %s30
      %p39 = scmp.eq.s32.totalorder %s22, 2
      %p40 = por %p38, %p39
      %p41 = scmp.ne.s32.totalorder %s30, %s31
      %p42 = scmp.eq.s32.totalorder %s22, 0
      %p43 = por %p41, %p42
      %p44 = scmp.ne.s32.totalorder %s30, %s31
      %p45 = scmp.eq.s32.totalorder %s23, 2
      %p46 = por %p44, %p45
      %p48 = scmp.ne.s32.totalorder %s31, %s47
      %p49 = scmp.eq.s32.totalorder %s23, 0
      %p50 = por %p48, %p49
      %s51 = ssub.s32 %s17, %s24
      %p52 = scmp.eq.s32.totalorder %s51, 0
      %s54 = sadd.s32 %s53, 1
      %s55 = scalar_select %p52, %s53, %s54
      %p58 = pneg %p52
      %p59 = scmp.eq.s32.totalorder %s17, 2
      %p60 = por %p58, %p59
      %p61 = scmp.ne.s32.totalorder %s53, %s56
      %p62 = scmp.eq.s32.totalorder %s17, 0
      %p63 = por %p61, %p62
      %p64 = scmp.ne.s32.totalorder %s53, %s56
      %p65 = scmp.eq.s32.totalorder %s22, 2
      %p66 = por %p64, %p65
      %p67 = scmp.ne.s32.totalorder %s56, %s57
      %p68 = scmp.eq.s32.totalorder %s22, 0
      %p69 = por %p67, %p68
      %p70 = scmp.ne.s32.totalorder %s56, %s57
      %p71 = scmp.eq.s32.totalorder %s23, 2
      %p72 = por %p70, %p71
      %p74 = scmp.ne.s32.totalorder %s57, %s73
      %p75 = scmp.eq.s32.totalorder %s23, 0
      %p76 = por %p74, %p75
      %s77 = ssub.s32 %s17, %s24
      %p78 = scmp.eq.s32.totalorder %s77, 0
      %s80 = sadd.s32 %s79, 1
      %s81 = scalar_select %p78, %s79, %s80
      %p84 = pneg %p78
      %p85 = scmp.eq.s32.totalorder %s17, 2
      %p86 = por %p84, %p85
      %p87 = scmp.ne.s32.totalorder %s79, %s82
      %p88 = scmp.eq.s32.totalorder %s17, 0
      %p89 = por %p87, %p88
      %p90 = scmp.ne.s32.totalorder %s79, %s82
      %p91 = scmp.eq.s32.totalorder %s22, 2
      %p92 = por %p90, %p91
      %p93 = scmp.ne.s32.totalorder %s82, %s83
      %p94 = scmp.eq.s32.totalorder %s22, 0
      %p95 = por %p93, %p94
      %p96 = scmp.ne.s32.totalorder %s82, %s83
      %p97 = scmp.eq.s32.totalorder %s23, 2
      %p98 = por %p96, %p97
      %p100 = scmp.ne.s32.totalorder %s83, %s99
      %p101 = scmp.eq.s32.totalorder %s23, 0
      %p102 = por %p100, %p101
      %p103 = scmp.le.s32.totalorder 1, %s17
      %p104 = scmp.lt.s32.totalorder %s17, 4
      %p105 = pnand %p103, %p104
      %p106 = pneg %p105
      // Predicated region
      $region9: #{tpu_custom_call.1} parent=5 // pred_check
        _
      $region10: #{tpu_custom_call.1} parent=5 // pred_check_branch
        %108 = sbr.rel (%p105) target = $region12
      $region11: #{tpu_custom_call.1} parent=5 // pred_region
        %s109 = ssub.s32 %s17, 1
      $region12: #{tpu_custom_call.1} parent=5 // pred_fallthru
        _
      %p110 = scmp.lt.s32.totalorder %s17, 3
      // Predicated region
      $region13: #{tpu_custom_call.1} parent=5 // pred_check
        %p111 = pneg %p110
      $region14: #{tpu_custom_call.1} parent=5 // pred_check_branch
        %113 = sbr.rel (%p111) target = $region16
      $region15: #{tpu_custom_call.1} parent=5 // pred_region
        // Predicated region
        $region17: #{tpu_custom_call.1} parent=15 // pred_check
          %p114 = pneg %p37
        $region18: #{tpu_custom_call.1} parent=15 // pred_check_branch
          %116 = sbr.rel (%p114) target = $region20
        $region19: #{tpu_custom_call.1} parent=15 // pred_region
          %s117 = sand.u32 %s27, 1
          %s118 = scalar_lea.sflag [#allocation3], %s117
          %s119 = sand.u32 %s27, 1
          %s120 = smul.addr %s119, 8
          %s121 = scalar_lea.vmem [#allocation2], %s120
          %123 = vsyncadd %s118, 0
          %s124 = smul.addr %s17, 8
          %s125 = scalar_lea.hbm %s0, %s124
          %s127 = sshll.u32 %s125, 4
          %s128 = int_to_ptr.hbm [resolvable:$true] %s127
          %s129 = sshll.u32 %s121, 4
          %s130 = int_to_ptr.vmem [resolvable:$true] %s129
          %132 = dma.hbm_to_vmem [thread:$0]  %s128, 128, %s130, %s118
        $region20: #{tpu_custom_call.1} parent=15 // pred_fallthru
          _
        // Predicated region
        $region21: #{tpu_custom_call.1} parent=15 // pred_check
          %p133 = pneg %p63
        $region22: #{tpu_custom_call.1} parent=15 // pred_check_branch
          %135 = sbr.rel (%p133) target = $region24
        $region23: #{tpu_custom_call.1} parent=15 // pred_region
          %s136 = sand.u32 %s53, 1
          %s137 = scalar_lea.sflag [#allocation6], %s136
          %s138 = sand.u32 %s53, 1
          %s139 = smul.addr %s138, 32
          %s140 = scalar_lea.vmem [#allocation5], %s139
          %142 = vsyncadd %s137, 0
          %s143 = smul.addr %s17, 4
          %s144 = smul.addr %s143, 8
          %s145 = scalar_lea.hbm %s1, %s144
          %s147 = sshll.u32 %s145, 4
          %s148 = int_to_ptr.hbm [resolvable:$true] %s147
          %s149 = sshll.u32 %s140, 4
          %s150 = int_to_ptr.vmem [resolvable:$true] %s149
          %152 = dma.hbm_to_vmem [thread:$0]  %s148, 512, %s150, %s137
        $region24: #{tpu_custom_call.1} parent=15 // pred_fallthru
          _
      $region16: #{tpu_custom_call.1} parent=5 // pred_fallthru
        _
      %p153 = scmp.le.s32.totalorder 1, %s17
      %p154 = scmp.lt.s32.totalorder %s17, 4
      %p155 = pnand %p153, %p154
      %p156 = pneg %p155
      // Predicated region
      $region25: #{tpu_custom_call.1} parent=5 // pred_check
        _
      $region26: #{tpu_custom_call.1} parent=5 // pred_check_branch
        %158 = sbr.rel (%p155) target = $region28
      $region27: #{tpu_custom_call.1} parent=5 // pred_region
        %s159 = ssub.s32 %s17, 1
        %s160 = sand.u32 %s30, 1
        %s161 = scalar_lea.sflag [#allocation3], %s160
        %s162 = sand.u32 %s30, 1
        %s163 = smul.addr %s162, 8
        %s164 = scalar_lea.vmem [#allocation2], %s163
        // Predicated region
        $region29: #{tpu_custom_call.1} parent=27 // pred_check
          %p165 = pneg %p43
        $region30: #{tpu_custom_call.1} parent=27 // pred_check_branch
          %167 = sbr.rel (%p165) target = $region32
        $region31: #{tpu_custom_call.1} parent=27 // pred_region
          %169 = dma.done %s161, 128
        $region32: #{tpu_custom_call.1} parent=27 // pred_fallthru
          _
        %s170 = sand.u32 %s56, 1
        %s171 = scalar_lea.sflag [#allocation6], %s170
        %s172 = sand.u32 %s56, 1
        %s173 = smul.addr %s172, 32
        %s174 = scalar_lea.vmem [#allocation5], %s173
        // Predicated region
        $region33: #{tpu_custom_call.1} parent=27 // pred_check
          %p175 = pneg %p69
        $region34: #{tpu_custom_call.1} parent=27 // pred_check_branch
          %177 = sbr.rel (%p175) target = $region36
        $region35: #{tpu_custom_call.1} parent=27 // pred_region
          %179 = dma.done %s171, 512
        $region36: #{tpu_custom_call.1} parent=27 // pred_fallthru
          _
        %s180 = sand.u32 %s30, 1
        %s181 = scalar_lea.sflag [#allocation3], %s180
        %s182 = sand.u32 %s30, 1
        %s183 = smul.addr %s182, 8
        %s184 = scalar_lea.vmem [#allocation2], %s183
        %p185 = pneg %p43
        %p186 = pneg %p40
        %s187 = sand.u32 %s56, 1
        %s188 = scalar_lea.sflag [#allocation6], %s187
        %s189 = sand.u32 %s56, 1
        %s190 = smul.addr %s189, 32
        %s191 = scalar_lea.vmem [#allocation5], %s190
        %p192 = pneg %p69
        %p193 = pneg %p66
        %p194 = pneg %p95
        %p195 = pneg %p92
        %s196 = sand.u32 %s82, 1
        %s197 = scalar_lea.sflag [#allocation4], %s196
        %s198 = sand.u32 %s82, 1
        %s199 = smul.addr %s198, 16
        %s200 = scalar_lea.vmem [#allocation7], %s199
        %v201 = vld [vmem:[%s164] sm:$0xff]
        %v202 = vld [vmem:[%s174] sm:$0xff]
        %v203 = vld [vmem:[%s174 + $0x8] sm:$0xff]
        %v204 = vld [vmem:[%s174 + $0x10] sm:$0xff]
        %v205 = vld [vmem:[%s174 + $0x18] sm:$0xff]
        %v206 = vrot.slane %v203, 4
        %vm207 = vcmask 1047556
        %v208 = vsel %vm207, %v206, %v201
        %v209 = vrot.slane %v201, 4
        %v210 = vsel %vm207, %v203, %v209
        %v212 = vunpack.c.l.s4 1983009808
        %v213 = vunpack.c.0.s8 %v212
        %v214 = vperm.slane %v208, %v213
        %v216 = vunpack.c.l.s4 1983009808
        %v217 = vunpack.c.0.s8 %v216
        %v218 = vperm.slane %v210, %v217
        %v219 = vrot.slane %v204, 4
        %v220 = vsel %vm207, %v219, %v202
        %v221 = vrot.slane %v202, 4
        %v222 = vsel %vm207, %v204, %v221
        %v224 = vunpack.c.l.s4 1983009808
        %v225 = vunpack.c.0.s8 %v224
        %v226 = vperm.slane %v220, %v225
        %v228 = vunpack.c.l.s4 1983009808
        %v229 = vunpack.c.0.s8 %v228
        %v230 = vperm.slane %v222, %v229
        %v231 = vrot.slane %v205, 4
        %v232 = vsel %vm207, 0.0, %v231
        %v234 = vunpack.c.l.s4 1983009808
        %v235 = vunpack.c.0.s8 %v234
        %v236 = vperm.slane %v205, %v235
        %v238 = vunpack.c.l.s4 1983009808
        %v239 = vunpack.c.0.s8 %v238
        %v240 = vperm.slane %v232, %v239
        %v241 = vrot.slane %v226, 4
        %v242 = vsel %vm207, %v241, %v214
        %v243 = vrot.slane %v214, 4
        %v244 = vsel %vm207, %v226, %v243
        %v246 = vunpack.c.l.s4 1934713408
        %v247 = vunpack.c.0.s8 %v246
        %v248 = vperm.slane %v242, %v247
        %v250 = vunpack.c.l.s4 1934713408
        %v251 = vunpack.c.0.s8 %v250
        %v252 = vperm.slane %v244, %v251
        %v253 = vrot.slane %v230, 4
        %v254 = vsel %vm207, %v253, %v218
        %v255 = vrot.slane %v218, 4
        %v256 = vsel %vm207, %v230, %v255
        %v258 = vunpack.c.l.s4 1934713408
        %v259 = vunpack.c.0.s8 %v258
        %v260 = vperm.slane %v254, %v259
        %v262 = vunpack.c.l.s4 1934713408
        %v263 = vunpack.c.0.s8 %v262
        %v264 = vperm.slane %v256, %v263
        %v265 = vrot.slane %v236, 4
        %v266 = vsel %vm207, 0.0, %v265
        %v268 = vunpack.c.l.s4 1934713408
        %v269 = vunpack.c.0.s8 %v268
        %v270 = vperm.slane %v236, %v269
        %v272 = vunpack.c.l.s4 1934713408
        %v273 = vunpack.c.0.s8 %v272
        %v274 = vperm.slane %v266, %v273
        %v275 = vrot.slane %v240, 4
        %v276 = vsel %vm207, 0.0, %v275
        %v278 = vunpack.c.l.s4 1934713408
        %v279 = vunpack.c.0.s8 %v278
        %v280 = vperm.slane %v240, %v279
        %v282 = vunpack.c.l.s4 1934713408
        %v283 = vunpack.c.0.s8 %v282
        %v284 = vperm.slane %v276, %v283
        %v285 = vrot.slane %v270, 4
        %v286 = vsel %vm207, %v285, %v248
        %v287 = vrot.slane %v248, 4
        %v288 = vsel %vm207, %v270, %v287
        %v289 = vrot.slane %v274, 4
        %v290 = vsel %vm207, %v289, %v252
        %v291 = vrot.slane %v252, 4
        %v292 = vsel %vm207, %v274, %v291
        %v293 = vrot.slane %v280, 4
        %v294 = vsel %vm207, %v293, %v260
        %v295 = vrot.slane %v260, 4
        %v296 = vsel %vm207, %v280, %v295
        %v297 = vrot.slane %v284, 4
        %v298 = vsel %vm207, %v297, %v264
        %v299 = vrot.slane %v264, 4
        %v300 = vsel %vm207, %v284, %v299
        %301 = vmatpush.xpose.msra.mxu0 0.0
        %302 = vmatpush.xpose.msra.mxu0 0.0
        %303 = vmatpush.xpose.msra.mxu0 0.0
        %304 = vmatpush.xpose.msra.mxu0 0.0
        %305 = vmatpush.xpose.msra.mxu0 0.0
        %306 = vmatpush.xpose.msra.mxu0 0.0
        %307 = vmatpush.xpose.msra.mxu0 0.0
        %308 = vmatpush.xpose.msra.mxu0 0.0
        %309 = vmatpush.xpose.msra.mxu0 0.0
        %310 = vmatpush.xpose.msra.mxu0 0.0
        %311 = vmatpush.xpose.msra.mxu0 0.0
        %312 = vmatpush.xpose.msra.mxu0 0.0
        %313 = vmatpush.xpose.msra.mxu0 0.0
        %314 = vmatpush.xpose.msra.mxu0 0.0
        %315 = vmatpush.xpose.msra.mxu0 0.0
        %316 = vmatpush.xpose.msra.mxu0 %v286
        %317 = vmatmul.f32.gmra.mxu0 %v286
        %v318 = vpop.f32.mrf.mxu0
        %v319 = vadd.f32 0.0, %v318
        %320 = vdwg.mxu0
        %321 = vmatpush.xpose.msra.mxu0 0.0
        %322 = vmatpush.xpose.msra.mxu0 0.0
        %323 = vmatpush.xpose.msra.mxu0 0.0
        %324 = vmatpush.xpose.msra.mxu0 0.0
        %325 = vmatpush.xpose.msra.mxu0 0.0
        %326 = vmatpush.xpose.msra.mxu0 0.0
        %327 = vmatpush.xpose.msra.mxu0 0.0
        %328 = vmatpush.xpose.msra.mxu0 0.0
        %329 = vmatpush.xpose.msra.mxu0 0.0
        %330 = vmatpush.xpose.msra.mxu0 0.0
        %331 = vmatpush.xpose.msra.mxu0 0.0
        %332 = vmatpush.xpose.msra.mxu0 0.0
        %333 = vmatpush.xpose.msra.mxu0 0.0
        %334 = vmatpush.xpose.msra.mxu0 0.0
        %335 = vmatpush.xpose.msra.mxu0 0.0
        %336 = vmatpush.xpose.msra.mxu0 %v288
        %337 = vmatmul.f32.gmra.mxu0 %v288
        %v338 = vpop.f32.mrf.mxu0
        %v339 = vadd.f32 0.0, %v338
        %340 = vdwg.mxu0
        %341 = vmatpush.xpose.msra.mxu0 0.0
        %342 = vmatpush.xpose.msra.mxu0 0.0
        %343 = vmatpush.xpose.msra.mxu0 0.0
        %344 = vmatpush.xpose.msra.mxu0 0.0
        %345 = vmatpush.xpose.msra.mxu0 0.0
        %346 = vmatpush.xpose.msra.mxu0 0.0
        %347 = vmatpush.xpose.msra.mxu0 0.0
        %348 = vmatpush.xpose.msra.mxu0 0.0
        %349 = vmatpush.xpose.msra.mxu0 0.0
        %350 = vmatpush.xpose.msra.mxu0 0.0
        %351 = vmatpush.xpose.msra.mxu0 0.0
        %352 = vmatpush.xpose.msra.mxu0 0.0
        %353 = vmatpush.xpose.msra.mxu0 0.0
        %354 = vmatpush.xpose.msra.mxu0 0.0
        %355 = vmatpush.xpose.msra.mxu0 0.0
        %356 = vmatpush.xpose.msra.mxu0 %v290
        %357 = vmatmul.f32.gmra.mxu0 %v290
        %v358 = vpop.f32.mrf.mxu0
        %v359 = vadd.f32 0.0, %v358
        %360 = vdwg.mxu0
        %361 = vmatpush.xpose.msra.mxu0 0.0
        %362 = vmatpush.xpose.msra.mxu0 0.0
        %363 = vmatpush.xpose.msra.mxu0 0.0
        %364 = vmatpush.xpose.msra.mxu0 0.0
        %365 = vmatpush.xpose.msra.mxu0 0.0
        %366 = vmatpush.xpose.msra.mxu0 0.0
        %367 = vmatpush.xpose.msra.mxu0 0.0
        %368 = vmatpush.xpose.msra.mxu0 0.0
        %369 = vmatpush.xpose.msra.mxu0 0.0
        %370 = vmatpush.xpose.msra.mxu0 0.0
        %371 = vmatpush.xpose.msra.mxu0 0.0
        %372 = vmatpush.xpose.msra.mxu0 0.0
        %373 = vmatpush.xpose.msra.mxu0 0.0
        %374 = vmatpush.xpose.msra.mxu0 0.0
        %375 = vmatpush.xpose.msra.mxu0 0.0
        %376 = vmatpush.xpose.msra.mxu0 %v292
        %377 = vmatmul.f32.gmra.mxu0 %v292
        %v378 = vpop.f32.mrf.mxu0
        %v379 = vadd.f32 0.0, %v378
        %380 = vdwg.mxu0
        %381 = vmatpush.xpose.msra.mxu0 0.0
        %382 = vmatpush.xpose.msra.mxu0 0.0
        %383 = vmatpush.xpose.msra.mxu0 0.0
        %384 = vmatpush.xpose.msra.mxu0 0.0
        %385 = vmatpush.xpose.msra.mxu0 0.0
        %386 = vmatpush.xpose.msra.mxu0 0.0
        %387 = vmatpush.xpose.msra.mxu0 0.0
        %388 = vmatpush.xpose.msra.mxu0 0.0
        %389 = vmatpush.xpose.msra.mxu0 0.0
        %390 = vmatpush.xpose.msra.mxu0 0.0
        %391 = vmatpush.xpose.msra.mxu0 0.0
        %392 = vmatpush.xpose.msra.mxu0 0.0
        %393 = vmatpush.xpose.msra.mxu0 0.0
        %394 = vmatpush.xpose.msra.mxu0 0.0
        %395 = vmatpush.xpose.msra.mxu0 0.0
        %396 = vmatpush.xpose.msra.mxu0 %v294
        %397 = vmatmul.f32.gmra.mxu0 %v294
        %v398 = vpop.f32.mrf.mxu0
        %v399 = vadd.f32 0.0, %v398
        %400 = vdwg.mxu0
        %401 = vmatpush.xpose.msra.mxu0 0.0
        %402 = vmatpush.xpose.msra.mxu0 0.0
        %403 = vmatpush.xpose.msra.mxu0 0.0
        %404 = vmatpush.xpose.msra.mxu0 0.0
        %405 = vmatpush.xpose.msra.mxu0 0.0
        %406 = vmatpush.xpose.msra.mxu0 0.0
        %407 = vmatpush.xpose.msra.mxu0 0.0
        %408 = vmatpush.xpose.msra.mxu0 0.0
        %409 = vmatpush.xpose.msra.mxu0 0.0
        %410 = vmatpush.xpose.msra.mxu0 0.0
        %411 = vmatpush.xpose.msra.mxu0 0.0
        %412 = vmatpush.xpose.msra.mxu0 0.0
        %413 = vmatpush.xpose.msra.mxu0 0.0
        %414 = vmatpush.xpose.msra.mxu0 0.0
        %415 = vmatpush.xpose.msra.mxu0 0.0
        %416 = vmatpush.xpose.msra.mxu0 %v296
        %417 = vmatmul.f32.gmra.mxu0 %v296
        %v418 = vpop.f32.mrf.mxu0
        %v419 = vadd.f32 0.0, %v418
        %420 = vdwg.mxu0
        %421 = vmatpush.xpose.msra.mxu0 0.0
        %422 = vmatpush.xpose.msra.mxu0 0.0
        %423 = vmatpush.xpose.msra.mxu0 0.0
        %424 = vmatpush.xpose.msra.mxu0 0.0
        %425 = vmatpush.xpose.msra.mxu0 0.0
        %426 = vmatpush.xpose.msra.mxu0 0.0
        %427 = vmatpush.xpose.msra.mxu0 0.0
        %428 = vmatpush.xpose.msra.mxu0 0.0
        %429 = vmatpush.xpose.msra.mxu0 0.0
        %430 = vmatpush.xpose.msra.mxu0 0.0
        %431 = vmatpush.xpose.msra.mxu0 0.0
        %432 = vmatpush.xpose.msra.mxu0 0.0
        %433 = vmatpush.xpose.msra.mxu0 0.0
        %434 = vmatpush.xpose.msra.mxu0 0.0
        %435 = vmatpush.xpose.msra.mxu0 0.0
        %436 = vmatpush.xpose.msra.mxu0 %v298
        %437 = vmatmul.f32.gmra.mxu0 %v298
        %v438 = vpop.f32.mrf.mxu0
        %v439 = vadd.f32 0.0, %v438
        %440 = vdwg.mxu0
        %441 = vmatpush.xpose.msra.mxu0 0.0
        %442 = vmatpush.xpose.msra.mxu0 0.0
        %443 = vmatpush.xpose.msra.mxu0 0.0
        %444 = vmatpush.xpose.msra.mxu0 0.0
        %445 = vmatpush.xpose.msra.mxu0 0.0
        %446 = vmatpush.xpose.msra.mxu0 0.0
        %447 = vmatpush.xpose.msra.mxu0 0.0
        %448 = vmatpush.xpose.msra.mxu0 0.0
        %449 = vmatpush.xpose.msra.mxu0 0.0
        %450 = vmatpush.xpose.msra.mxu0 0.0
        %451 = vmatpush.xpose.msra.mxu0 0.0
        %452 = vmatpush.xpose.msra.mxu0 0.0
        %453 = vmatpush.xpose.msra.mxu0 0.0
        %454 = vmatpush.xpose.msra.mxu0 0.0
        %455 = vmatpush.xpose.msra.mxu0 0.0
        %456 = vmatpush.xpose.msra.mxu0 %v300
        %457 = vmatmul.f32.gmra.mxu0 %v300
        %v458 = vpop.f32.mrf.mxu0
        %v459 = vadd.f32 0.0, %v458
        %460 = vdwg.mxu0
        %v469 = vrot.slane %v339, 7
        %vm470 = vcmask 1041409
        %v471 = vsel %vm470, %v469, %v319
        %v472 = vrot.slane %v359, 6
        %vm473 = vcmask 1042434
        %v474 = vsel %vm473, %v472, %v471
        %v475 = vrot.slane %v379, 5
        %vm476 = vcmask 1043459
        %v477 = vsel %vm476, %v475, %v474
        %v478 = vrot.slane %v399, 4
        %vm479 = vcmask 1044484
        %v480 = vsel %vm479, %v478, %v477
        %v481 = vrot.slane %v419, 3
        %vm482 = vcmask 1045509
        %v483 = vsel %vm482, %v481, %v480
        %v484 = vrot.slane %v439, 2
        %vm485 = vcmask 1046534
        %v486 = vsel %vm485, %v484, %v483
        %v487 = vrot.slane %v459, 1
        %vm488 = vcmask 1047559
        %v489 = vsel %vm488, %v487, %v486
        %490 = vrot.lane.b32.xlu0 %v489, 127
        %v491 = vpop.permute.xlu0 %490
        %v493 = vrot.slane %v319, 1
        %v494 = vsel %vm470, %v339, %v493
        %v495 = vrot.slane %v359, 7
        %v496 = vsel %vm473, %v495, %v494
        %v497 = vrot.slane %v379, 6
        %v498 = vsel %vm476, %v497, %v496
        %v499 = vrot.slane %v399, 5
        %v500 = vsel %vm479, %v499, %v498
        %v501 = vrot.slane %v419, 4
        %v502 = vsel %vm482, %v501, %v500
        %v503 = vrot.slane %v439, 3
        %v504 = vsel %vm485, %v503, %v502
        %v505 = vrot.slane %v459, 2
        %v506 = vsel %vm488, %v505, %v504
        %507 = vrot.lane.b32.xlu0 %v506, 2
        %v508 = vpop.permute.xlu0 %507
        %v510 = vrot.slane %v319, 2
        %v511 = vrot.slane %v339, 1
        %v512 = vsel %vm470, %v511, %v510
        %v513 = vsel %vm473, %v359, %v512
        %v514 = vrot.slane %v379, 7
        %v515 = vsel %vm476, %v514, %v513
        %v516 = vrot.slane %v399, 6
        %v517 = vsel %vm479, %v516, %v515
        %v518 = vrot.slane %v419, 5
        %v519 = vsel %vm482, %v518, %v517
        %v520 = vrot.slane %v439, 4
        %v521 = vsel %vm485, %v520, %v519
        %v522 = vrot.slane %v459, 3
        %v523 = vsel %vm488, %v522, %v521
        %524 = vrot.lane.b32.xlu0 %v523, 4
        %v525 = vpop.permute.xlu0 %524
        %v527 = vrot.slane %v319, 3
        %v528 = vrot.slane %v339, 2
        %v529 = vsel %vm470, %v528, %v527
        %v530 = vrot.slane %v359, 1
        %v531 = vsel %vm473, %v530, %v529
        %v532 = vsel %vm476, %v379, %v531
        %v533 = vrot.slane %v399, 7
        %v534 = vsel %vm479, %v533, %v532
        %v535 = vrot.slane %v419, 6
        %v536 = vsel %vm482, %v535, %v534
        %v537 = vrot.slane %v439, 5
        %v538 = vsel %vm485, %v537, %v536
        %v539 = vrot.slane %v459, 4
        %v540 = vsel %vm488, %v539, %v538
        %541 = vrot.lane.b32.xlu0 %v540, 5
        %v542 = vpop.permute.xlu0 %541
        %vm544 = vcmask 31744
        %v545 = vsel %vm544, %v491, %v508
        %vm546 = vcmask 56320
        %v547 = vsel %vm546, %v545, %v525
        %vm548 = vcmask 72704
        %v549 = vsel %vm548, %v547, %v542
        %550 = vst [vmem:[%s200] sm:$0xff] %v201
        %vm551 = vcmask 80896
        %552 = vst.msk [vmem:[%s200 + $0x8] sm:$0xff] %vm551, %v549
        %s553 = sand.u32 %s82, 1
        %s554 = scalar_lea.sflag [#allocation4], %s553
        %s555 = sand.u32 %s82, 1
        %s556 = smul.addr %s555, 16
        %s557 = scalar_lea.vmem [#allocation7], %s556
        // Predicated region
        $region37: #{tpu_custom_call.1} parent=27 // pred_check
          %p558 = pneg %p92
        $region38: #{tpu_custom_call.1} parent=27 // pred_check_branch
          %560 = sbr.rel (%p558) target = $region40
        $region39: #{tpu_custom_call.1} parent=27 // pred_region
          %562 = vsyncadd %s554, 0
          %s563 = smul.addr %s22, 2
          %s564 = smul.addr %s563, 8
          %s565 = scalar_lea.hbm %s2, %s564
          %s567 = sshll.u32 %s557, 4
          %s568 = int_to_ptr.vmem [resolvable:$true] %s567
          %s569 = sshll.u32 %s565, 4
          %s570 = int_to_ptr.hbm [resolvable:$true] %s569
          %572 = dma.vmem_to_hbm [thread:$0]  %s568, 256, %s570, %s554
        $region40: #{tpu_custom_call.1} parent=27 // pred_fallthru
          _
      $region28: #{tpu_custom_call.1} parent=5 // pred_fallthru
        _
      %p573 = scmp.le.s32.totalorder 2, %s17
      // Predicated region
      $region41: #{tpu_custom_call.1} parent=5 // pred_check
        %p574 = pneg %p573
      $region42: #{tpu_custom_call.1} parent=5 // pred_check_branch
        %576 = sbr.rel (%p574) target = $region44
      $region43: #{tpu_custom_call.1} parent=5 // pred_region
        %s577 = ssub.s32 %s17, 2
        // Predicated region
        $region45: #{tpu_custom_call.1} parent=43 // pred_check
          %p578 = pneg %p98
        $region46: #{tpu_custom_call.1} parent=43 // pred_check_branch
          %580 = sbr.rel (%p578) target = $region48
        $region47: #{tpu_custom_call.1} parent=43 // pred_region
          %s581 = sand.u32 %s83, 1
          %s582 = scalar_lea.sflag [#allocation4], %s581
          %s583 = sand.u32 %s83, 1
          %s584 = smul.addr %s583, 16
          %s585 = scalar_lea.vmem [#allocation7], %s584
          %587 = dma.done %s582, 256
        $region48: #{tpu_custom_call.1} parent=43 // pred_fallthru
          _
      $region44: #{tpu_custom_call.1} parent=5 // pred_fallthru
        _
    $region6: #{tpu_custom_call.1} parent=1 // loop_footer
      %s21 = sadd.s32 1, %s17
    $region7: #{tpu_custom_call.1} parent=1 // loop_footer_branch
      %16 = sbr.rel target = $region3
    $region8: #{tpu_custom_call.1} parent=1 // loop_exit
      _
    %588 = vsyncpa [#allocation3], 1
    %s589 = scalar_lea.sflag [#allocation3], 1
    %590 = vsyncpa %s589, 1
    %591 = vsyncpa [#allocation6], 1
    %s592 = scalar_lea.sflag [#allocation6], 1
    %593 = vsyncpa %s592, 1
    %594 = vsyncpa [#allocation4], 1
    %s595 = scalar_lea.sflag [#allocation4], 1
    %596 = vsyncpa %s595, 1

</llo_original>
